<compile_context>
chip_gen: v5e
topology: v5e:2x2
jax: 0.10.0
libtpu: 0.0.40
codegen_flags: <defaults>
</compile_context>

<pallas_src>
import functools

import jax
import jax.numpy as jnp
from jax import lax
from jax.experimental import pallas as pl
from jax.experimental.pallas import tpu as pltpu


def _cdiv(a: int, b: int) -> int:
    return -(-a // b)


def _round_up(a: int, b: int) -> int:
    return _cdiv(a, b) * b


def _pose_gather_kernel(flat_idx_ref,   # SMEM int32 [K_pad]     flat row index per detection
                        src_hbm,        # HBM  f32   [BN, W_pad] fused, output-aligned rows
                        bcol_ref,       # VMEM f32   [TK, 1]     image-index column
                        *rest,
                        TK: int, S: int):
    if S > 1:
        scol_ref, out_ref, row_buf, sems = rest
    else:
        out_ref, row_buf, sems = rest
        scol_ref = None

    t = pl.program_id(0)
    base = t * TK

    # ---- Phase 1: read SMEM indices and launch one fused row DMA per detection. ----
    # All TK DMAs of this tile are in flight before any wait is issued.
    copies = []
    for r in range(TK):
        flat = flat_idx_ref[base + r]
        cp = pltpu.make_async_copy(src_hbm.at[flat], row_buf.at[r], sems.at[r])
        cp.start()
        copies.append(cp)

    # ---- Phase 2: wait on the original descriptors (TK waits; single fused source). ----
    for cp in copies:
        cp.wait()

    # ---- Phase 3: one lane-dense full-tile store. ----
    # Source rows are already output-aligned ([pad, x1, y1, x2, y2, score, joints..., pad]);
    # patch lane 0 with the image index (and lane 5 with the per-label score when S > 1).
    tile = row_buf[...]
    lane = lax.broadcasted_iota(jnp.int32, tile.shape, 1)
    tile = jnp.where(lane == 0, bcol_ref[...], tile)
    if S > 1:
        tile = jnp.where(lane == 5, scol_ref[...], tile)
    out_ref[...] = tile


def pose_nms_and_return_as_flat_result(pred_boxes, pred_scores, pred_joints,
                                       selected_indexes, *, tile_k_max: int = 128):
    """JAX/Pallas equivalent of PoseNMSAndReturnAsFlatResult.forward."""
    B, N, _ = pred_boxes.shape
    S = pred_scores.shape[2]
    J = pred_joints.shape[2]
    K = selected_indexes.shape[0]
    BN = B * N
    J3 = 3 * J
    W = 1 + 4 + 1 + J3                 # [img_idx, box(4), score, joints(3J)]
    W_pad = _round_up(W, 64)           # keep the tile store lane-dense-ish

    # TK: multiple of 8, as large as possible (per-grid-step overhead ~0.35us), but
    # capped so >= 2 tiles exist when K permits -> "parallel" axis can use both v7x TCs.
    TK = min(tile_k_max, max(8, _round_up(_cdiv(K, 2), 8)))
    K_pad = max(TK, _round_up(K, TK))
    num_tiles = K_pad // TK

    out_dtype = pred_scores.dtype      # torch uses selected_scores.dtype

    # ---- Wrapper-side index math (scalar prefetch operand, lives in SMEM). ----
    idx = selected_indexes.astype(jnp.int32)
    b_idx, lbl_idx, x_idx = idx[:, 0], idx[:, 1], idx[:, 2]
    flat_idx = jnp.clip(b_idx * N + x_idx, 0, BN - 1)       # defensive clamp (no HW OOB check)
    flat_idx = jnp.pad(flat_idx, (0, K_pad - K))            # padded rows gather row 0

    # ---- Fused, output-aligned gather source: [BN, W_pad]. ----
    zeros_col = jnp.zeros((BN, 1), out_dtype)
    boxes2 = pred_boxes.reshape(BN, 4).astype(out_dtype)
    joints2 = pred_joints.reshape(BN, J3).astype(out_dtype)
    if S == 1:
        score_col = pred_scores.reshape(BN, 1).astype(out_dtype)
    else:
        score_col = jnp.zeros((BN, 1), out_dtype)           # patched in-kernel for S > 1
    pad_cols = jnp.zeros((BN, W_pad - W), out_dtype)
    src = jnp.concatenate([zeros_col, boxes2, score_col, joints2, pad_cols], axis=1)

    # ---- Per-detection columns (cheap XLA gathers in the wrapper). ----
    b_col = jnp.pad(b_idx.astype(out_dtype), (0, K_pad - K)).reshape(K_pad, 1)

    operands = [flat_idx, src, b_col]
    in_specs = [
        pl.BlockSpec(memory_space=pl.ANY),                       # fused source stays in HBM
        pl.BlockSpec((TK, 1), lambda t, idx_ref: (t, 0)),        # image-index column (VMEM)
    ]
    if S > 1:
        sel_scores = pred_scores[b_idx, x_idx, lbl_idx].astype(out_dtype)
        s_col = jnp.pad(sel_scores, (0, K_pad - K)).reshape(K_pad, 1)
        operands.append(s_col)
        in_specs.append(pl.BlockSpec((TK, 1), lambda t, idx_ref: (t, 0)))

    kernel = functools.partial(_pose_gather_kernel, TK=TK, S=S)

    grid_spec = pltpu.PrefetchScalarGridSpec(
        num_scalar_prefetch=1,
        grid=(num_tiles,),
        in_specs=in_specs,
        out_specs=pl.BlockSpec((TK, W_pad), lambda t, idx_ref: (t, 0)),
        scratch_shapes=[
            pltpu.VMEM((TK, W_pad), out_dtype),      # output-aligned gather tile
            pltpu.SemaphoreType.DMA((TK,)),          # one sem per row copy
        ],
    )

    out = pl.pallas_call(
        kernel,
        out_shape=jax.ShapeDtypeStruct((K_pad, W_pad), out_dtype),
        grid_spec=grid_spec,
        compiler_params=pltpu.CompilerParams(
            dimension_semantics=("parallel",)),      # tiles are independent -> v7x can shard
    )(*operands)

    return out[:K, :W]


def _reference(pred_boxes, pred_scores, pred_joints, selected_indexes):
    """Pure-jnp reference mirroring the PyTorch forward."""
    b = selected_indexes[:, 0]
    lbl = selected_indexes[:, 1]
    x = selected_indexes[:, 2]
    K = selected_indexes.shape[0]
    sel_boxes = pred_boxes[b, x]
    sel_scores = pred_scores[b, x, lbl]
    sel_poses = pred_joints[b, x].reshape(K, -1)
    dtype = sel_scores.dtype
    return jnp.concatenate(
        [b.astype(dtype)[:, None], sel_boxes.astype(dtype),
         sel_scores[:, None], sel_poses.astype(dtype)], axis=1)


if __name__ == "__main__":
    # Small shapes consistent with the module: batch_size=2, N=8 pre-NMS
    # predictions per image, 17 joints, 6 selected detections total.
    B, N, J, K = 2, 8, 17, 6

    key = jax.random.PRNGKey(0)
    k_boxes, k_scores, k_joints, k_bidx, k_xidx, k_scores3, k_lbl3 = jax.random.split(key, 7)

    pred_boxes = jax.random.uniform(k_boxes, (B, N, 4), dtype=jnp.float32) * 64.0
    pred_scores = jax.random.uniform(k_scores, (B, N, 1), dtype=jnp.float32)
    pred_joints = jax.random.uniform(k_joints, (B, N, J, 3), dtype=jnp.float32) * 32.0

    batch_idx = jax.random.randint(k_bidx, (K,), 0, B, dtype=jnp.int32)
    box_idx = jax.random.randint(k_xidx, (K,), 0, N, dtype=jnp.int32)
    label_idx = jnp.zeros((K,), dtype=jnp.int32)          # single-class pose task
    selected_indexes = jnp.stack([batch_idx, label_idx, box_idx], axis=1)

    # --- Primary test: S == 1 (module semantics). ---
    out = pose_nms_and_return_as_flat_result(
        pred_boxes, pred_scores, pred_joints, selected_indexes)
    out = jax.block_until_ready(out)
    ref = _reference(pred_boxes, pred_scores, pred_joints, selected_indexes)
    assert out.shape == (K, 1 + 4 + 1 + 3 * J), out.shape
    assert jnp.allclose(out, ref, atol=1e-6, rtol=1e-6), (out, ref)

    # --- Secondary test: generic S > 1 path (score patched from wrapper gather). ---
    S3 = 3
    pred_scores3 = jax.random.uniform(k_scores3, (B, N, S3), dtype=jnp.float32)
    label_idx3 = jax.random.randint(k_lbl3, (K,), 0, S3, dtype=jnp.int32)
    selected_indexes3 = jnp.stack([batch_idx, label_idx3, box_idx], axis=1)
    out3 = pose_nms_and_return_as_flat_result(
        pred_boxes, pred_scores3, pred_joints, selected_indexes3)
    out3 = jax.block_until_ready(out3)
    ref3 = _reference(pred_boxes, pred_scores3, pred_joints, selected_indexes3)
    assert jnp.allclose(out3, ref3, atol=1e-6, rtol=1e-6), (out3, ref3)

    print("KERNEL_OK")
</pallas_src>

<mosaic_0001>
module attributes {stable_mosaic.version = 11 : i64} {
  func.func @_pose_gather_kernel(%arg0: i32, %arg1: memref<8xi32, #tpu.memory_space<smem>>, %arg2: memref<16x64xf32, #tpu.memory_space<any>>, %arg3: memref<8x1xf32, #tpu.memory_space<vmem>>, %arg4: memref<8x64xf32, #tpu.memory_space<vmem>>, %arg5: memref<8x64xf32, #tpu.memory_space<vmem>>, %arg6: memref<8x!tpu.dma_semaphore, #tpu.memory_space<semaphore_mem>>) attributes {dimension_semantics = [#tpu.dimension_semantics<parallel>], iteration_bounds = array<i64: 1>, scalar_prefetch = 1 : i64, scratch_operands = 2 : i64, tpu.core_type = #tpu.core_type<tc>, window_params = [{}, {transform_indices = @transform_1, window_bounds = array<i64: 8, 1>}, {transform_indices = @transform_2, window_bounds = array<i64: 8, 64>}]} {
    %c8_i32 = arith.constant 8 : i32
    %0 = arith.muli %arg0, %c8_i32 : i32
    %c0_i32 = arith.constant 0 : i32
    %1 = arith.addi %0, %c0_i32 : i32
    %2 = arith.index_cast %1 : i32 to index
    %3 = memref.load %arg1[%2] : memref<8xi32, #tpu.memory_space<smem>>
    %c0_i32_0 = arith.constant 0 : i32
    %c0_i32_1 = arith.constant 0 : i32
    %c0_i32_2 = arith.constant 0 : i32
    %4 = tpu.memref_slice %arg2[%3, %c0_i32_2] : memref<16x64xf32, #tpu.memory_space<any>> -> memref<1x64xf32, #tpu.memory_space<any>>
    %5 = tpu.memref_squeeze %4 : memref<1x64xf32, #tpu.memory_space<any>> -> memref<64xf32, #tpu.memory_space<any>>
    %c0_i32_3 = arith.constant 0 : i32
    %6 = tpu.memref_slice %arg5[%c0_i32_0, %c0_i32_3] : memref<8x64xf32, #tpu.memory_space<vmem>> -> memref<1x64xf32, #tpu.memory_space<vmem>>
    %7 = tpu.memref_squeeze %6 : memref<1x64xf32, #tpu.memory_space<vmem>> -> memref<64xf32, #tpu.memory_space<vmem>>
    %8 = tpu.memref_slice %arg6[%c0_i32_1] : memref<8x!tpu.dma_semaphore, #tpu.memory_space<semaphore_mem>> -> memref<1x!tpu.dma_semaphore, #tpu.memory_space<semaphore_mem>>
    %9 = tpu.memref_squeeze %8 : memref<1x!tpu.dma_semaphore, #tpu.memory_space<semaphore_mem>> -> memref<!tpu.dma_semaphore, #tpu.memory_space<semaphore_mem>>
    tpu.enqueue_dma source(%5 : memref<64xf32, #tpu.memory_space<any>>) target(%7 : memref<64xf32, #tpu.memory_space<vmem>>) target_semaphore(%9 : memref<!tpu.dma_semaphore, #tpu.memory_space<semaphore_mem>>)
    %c1_i32 = arith.constant 1 : i32
    %10 = arith.addi %0, %c1_i32 : i32
    %11 = arith.index_cast %10 : i32 to index
    %12 = memref.load %arg1[%11] : memref<8xi32, #tpu.memory_space<smem>>
    %c1_i32_4 = arith.constant 1 : i32
    %c1_i32_5 = arith.constant 1 : i32
    %c0_i32_6 = arith.constant 0 : i32
    %13 = tpu.memref_slice %arg2[%12, %c0_i32_6] : memref<16x64xf32, #tpu.memory_space<any>> -> memref<1x64xf32, #tpu.memory_space<any>>
    %14 = tpu.memref_squeeze %13 : memref<1x64xf32, #tpu.memory_space<any>> -> memref<64xf32, #tpu.memory_space<any>>
    %c0_i32_7 = arith.constant 0 : i32
    %15 = tpu.memref_slice %arg5[%c1_i32_4, %c0_i32_7] : memref<8x64xf32, #tpu.memory_space<vmem>> -> memref<1x64xf32, #tpu.memory_space<vmem>>
    %16 = tpu.memref_squeeze %15 : memref<1x64xf32, #tpu.memory_space<vmem>> -> memref<64xf32, #tpu.memory_space<vmem>>
    %17 = tpu.memref_slice %arg6[%c1_i32_5] : memref<8x!tpu.dma_semaphore, #tpu.memory_space<semaphore_mem>> -> memref<1x!tpu.dma_semaphore, #tpu.memory_space<semaphore_mem>>
    %18 = tpu.memref_squeeze %17 : memref<1x!tpu.dma_semaphore, #tpu.memory_space<semaphore_mem>> -> memref<!tpu.dma_semaphore, #tpu.memory_space<semaphore_mem>>
    tpu.enqueue_dma source(%14 : memref<64xf32, #tpu.memory_space<any>>) target(%16 : memref<64xf32, #tpu.memory_space<vmem>>) target_semaphore(%18 : memref<!tpu.dma_semaphore, #tpu.memory_space<semaphore_mem>>)
    %c2_i32 = arith.constant 2 : i32
    %19 = arith.addi %0, %c2_i32 : i32
    %20 = arith.index_cast %19 : i32 to index
    %21 = memref.load %arg1[%20] : memref<8xi32, #tpu.memory_space<smem>>
    %c2_i32_8 = arith.constant 2 : i32
    %c2_i32_9 = arith.constant 2 : i32
    %c0_i32_10 = arith.constant 0 : i32
    %22 = tpu.memref_slice %arg2[%21, %c0_i32_10] : memref<16x64xf32, #tpu.memory_space<any>> -> memref<1x64xf32, #tpu.memory_space<any>>
    %23 = tpu.memref_squeeze %22 : memref<1x64xf32, #tpu.memory_space<any>> -> memref<64xf32, #tpu.memory_space<any>>
    %c0_i32_11 = arith.constant 0 : i32
    %24 = tpu.memref_slice %arg5[%c2_i32_8, %c0_i32_11] : memref<8x64xf32, #tpu.memory_space<vmem>> -> memref<1x64xf32, #tpu.memory_space<vmem>>
    %25 = tpu.memref_squeeze %24 : memref<1x64xf32, #tpu.memory_space<vmem>> -> memref<64xf32, #tpu.memory_space<vmem>>
    %26 = tpu.memref_slice %arg6[%c2_i32_9] : memref<8x!tpu.dma_semaphore, #tpu.memory_space<semaphore_mem>> -> memref<1x!tpu.dma_semaphore, #tpu.memory_space<semaphore_mem>>
    %27 = tpu.memref_squeeze %26 : memref<1x!tpu.dma_semaphore, #tpu.memory_space<semaphore_mem>> -> memref<!tpu.dma_semaphore, #tpu.memory_space<semaphore_mem>>
    tpu.enqueue_dma source(%23 : memref<64xf32, #tpu.memory_space<any>>) target(%25 : memref<64xf32, #tpu.memory_space<vmem>>) target_semaphore(%27 : memref<!tpu.dma_semaphore, #tpu.memory_space<semaphore_mem>>)
    %c3_i32 = arith.constant 3 : i32
    %28 = arith.addi %0, %c3_i32 : i32
    %29 = arith.index_cast %28 : i32 to index
    %30 = memref.load %arg1[%29] : memref<8xi32, #tpu.memory_space<smem>>
    %c3_i32_12 = arith.constant 3 : i32
    %c3_i32_13 = arith.constant 3 : i32
    %c0_i32_14 = arith.constant 0 : i32
    %31 = tpu.memref_slice %arg2[%30, %c0_i32_14] : memref<16x64xf32, #tpu.memory_space<any>> -> memref<1x64xf32, #tpu.memory_space<any>>
    %32 = tpu.memref_squeeze %31 : memref<1x64xf32, #tpu.memory_space<any>> -> memref<64xf32, #tpu.memory_space<any>>
    %c0_i32_15 = arith.constant 0 : i32
    %33 = tpu.memref_slice %arg5[%c3_i32_12, %c0_i32_15] : memref<8x64xf32, #tpu.memory_space<vmem>> -> memref<1x64xf32, #tpu.memory_space<vmem>>
    %34 = tpu.memref_squeeze %33 : memref<1x64xf32, #tpu.memory_space<vmem>> -> memref<64xf32, #tpu.memory_space<vmem>>
    %35 = tpu.memref_slice %arg6[%c3_i32_13] : memref<8x!tpu.dma_semaphore, #tpu.memory_space<semaphore_mem>> -> memref<1x!tpu.dma_semaphore, #tpu.memory_space<semaphore_mem>>
    %36 = tpu.memref_squeeze %35 : memref<1x!tpu.dma_semaphore, #tpu.memory_space<semaphore_mem>> -> memref<!tpu.dma_semaphore, #tpu.memory_space<semaphore_mem>>
    tpu.enqueue_dma source(%32 : memref<64xf32, #tpu.memory_space<any>>) target(%34 : memref<64xf32, #tpu.memory_space<vmem>>) target_semaphore(%36 : memref<!tpu.dma_semaphore, #tpu.memory_space<semaphore_mem>>)
    %c4_i32 = arith.constant 4 : i32
    %37 = arith.addi %0, %c4_i32 : i32
    %38 = arith.index_cast %37 : i32 to index
    %39 = memref.load %arg1[%38] : memref<8xi32, #tpu.memory_space<smem>>
    %c4_i32_16 = arith.constant 4 : i32
    %c4_i32_17 = arith.constant 4 : i32
    %c0_i32_18 = arith.constant 0 : i32
    %40 = tpu.memref_slice %arg2[%39, %c0_i32_18] : memref<16x64xf32, #tpu.memory_space<any>> -> memref<1x64xf32, #tpu.memory_space<any>>
    %41 = tpu.memref_squeeze %40 : memref<1x64xf32, #tpu.memory_space<any>> -> memref<64xf32, #tpu.memory_space<any>>
    %c0_i32_19 = arith.constant 0 : i32
    %42 = tpu.memref_slice %arg5[%c4_i32_16, %c0_i32_19] : memref<8x64xf32, #tpu.memory_space<vmem>> -> memref<1x64xf32, #tpu.memory_space<vmem>>
    %43 = tpu.memref_squeeze %42 : memref<1x64xf32, #tpu.memory_space<vmem>> -> memref<64xf32, #tpu.memory_space<vmem>>
    %44 = tpu.memref_slice %arg6[%c4_i32_17] : memref<8x!tpu.dma_semaphore, #tpu.memory_space<semaphore_mem>> -> memref<1x!tpu.dma_semaphore, #tpu.memory_space<semaphore_mem>>
    %45 = tpu.memref_squeeze %44 : memref<1x!tpu.dma_semaphore, #tpu.memory_space<semaphore_mem>> -> memref<!tpu.dma_semaphore, #tpu.memory_space<semaphore_mem>>
    tpu.enqueue_dma source(%41 : memref<64xf32, #tpu.memory_space<any>>) target(%43 : memref<64xf32, #tpu.memory_space<vmem>>) target_semaphore(%45 : memref<!tpu.dma_semaphore, #tpu.memory_space<semaphore_mem>>)
    %c5_i32 = arith.constant 5 : i32
    %46 = arith.addi %0, %c5_i32 : i32
    %47 = arith.index_cast %46 : i32 to index
    %48 = memref.load %arg1[%47] : memref<8xi32, #tpu.memory_space<smem>>
    %c5_i32_20 = arith.constant 5 : i32
    %c5_i32_21 = arith.constant 5 : i32
    %c0_i32_22 = arith.constant 0 : i32
    %49 = tpu.memref_slice %arg2[%48, %c0_i32_22] : memref<16x64xf32, #tpu.memory_space<any>> -> memref<1x64xf32, #tpu.memory_space<any>>
    %50 = tpu.memref_squeeze %49 : memref<1x64xf32, #tpu.memory_space<any>> -> memref<64xf32, #tpu.memory_space<any>>
    %c0_i32_23 = arith.constant 0 : i32
    %51 = tpu.memref_slice %arg5[%c5_i32_20, %c0_i32_23] : memref<8x64xf32, #tpu.memory_space<vmem>> -> memref<1x64xf32, #tpu.memory_space<vmem>>
    %52 = tpu.memref_squeeze %51 : memref<1x64xf32, #tpu.memory_space<vmem>> -> memref<64xf32, #tpu.memory_space<vmem>>
    %53 = tpu.memref_slice %arg6[%c5_i32_21] : memref<8x!tpu.dma_semaphore, #tpu.memory_space<semaphore_mem>> -> memref<1x!tpu.dma_semaphore, #tpu.memory_space<semaphore_mem>>
    %54 = tpu.memref_squeeze %53 : memref<1x!tpu.dma_semaphore, #tpu.memory_space<semaphore_mem>> -> memref<!tpu.dma_semaphore, #tpu.memory_space<semaphore_mem>>
    tpu.enqueue_dma source(%50 : memref<64xf32, #tpu.memory_space<any>>) target(%52 : memref<64xf32, #tpu.memory_space<vmem>>) target_semaphore(%54 : memref<!tpu.dma_semaphore, #tpu.memory_space<semaphore_mem>>)
    %c6_i32 = arith.constant 6 : i32
    %55 = arith.addi %0, %c6_i32 : i32
    %56 = arith.index_cast %55 : i32 to index
    %57 = memref.load %arg1[%56] : memref<8xi32, #tpu.memory_space<smem>>
    %c6_i32_24 = arith.constant 6 : i32
    %c6_i32_25 = arith.constant 6 : i32
    %c0_i32_26 = arith.constant 0 : i32
    %58 = tpu.memref_slice %arg2[%57, %c0_i32_26] : memref<16x64xf32, #tpu.memory_space<any>> -> memref<1x64xf32, #tpu.memory_space<any>>
    %59 = tpu.memref_squeeze %58 : memref<1x64xf32, #tpu.memory_space<any>> -> memref<64xf32, #tpu.memory_space<any>>
    %c0_i32_27 = arith.constant 0 : i32
    %60 = tpu.memref_slice %arg5[%c6_i32_24, %c0_i32_27] : memref<8x64xf32, #tpu.memory_space<vmem>> -> memref<1x64xf32, #tpu.memory_space<vmem>>
    %61 = tpu.memref_squeeze %60 : memref<1x64xf32, #tpu.memory_space<vmem>> -> memref<64xf32, #tpu.memory_space<vmem>>
    %62 = tpu.memref_slice %arg6[%c6_i32_25] : memref<8x!tpu.dma_semaphore, #tpu.memory_space<semaphore_mem>> -> memref<1x!tpu.dma_semaphore, #tpu.memory_space<semaphore_mem>>
    %63 = tpu.memref_squeeze %62 : memref<1x!tpu.dma_semaphore, #tpu.memory_space<semaphore_mem>> -> memref<!tpu.dma_semaphore, #tpu.memory_space<semaphore_mem>>
    tpu.enqueue_dma source(%59 : memref<64xf32, #tpu.memory_space<any>>) target(%61 : memref<64xf32, #tpu.memory_space<vmem>>) target_semaphore(%63 : memref<!tpu.dma_semaphore, #tpu.memory_space<semaphore_mem>>)
    %c7_i32 = arith.constant 7 : i32
    %64 = arith.addi %0, %c7_i32 : i32
    %65 = arith.index_cast %64 : i32 to index
    %66 = memref.load %arg1[%65] : memref<8xi32, #tpu.memory_space<smem>>
    %c7_i32_28 = arith.constant 7 : i32
    %c7_i32_29 = arith.constant 7 : i32
    %c0_i32_30 = arith.constant 0 : i32
    %67 = tpu.memref_slice %arg2[%66, %c0_i32_30] : memref<16x64xf32, #tpu.memory_space<any>> -> memref<1x64xf32, #tpu.memory_space<any>>
    %68 = tpu.memref_squeeze %67 : memref<1x64xf32, #tpu.memory_space<any>> -> memref<64xf32, #tpu.memory_space<any>>
    %c0_i32_31 = arith.constant 0 : i32
    %69 = tpu.memref_slice %arg5[%c7_i32_28, %c0_i32_31] : memref<8x64xf32, #tpu.memory_space<vmem>> -> memref<1x64xf32, #tpu.memory_space<vmem>>
    %70 = tpu.memref_squeeze %69 : memref<1x64xf32, #tpu.memory_space<vmem>> -> memref<64xf32, #tpu.memory_space<vmem>>
    %71 = tpu.memref_slice %arg6[%c7_i32_29] : memref<8x!tpu.dma_semaphore, #tpu.memory_space<semaphore_mem>> -> memref<1x!tpu.dma_semaphore, #tpu.memory_space<semaphore_mem>>
    %72 = tpu.memref_squeeze %71 : memref<1x!tpu.dma_semaphore, #tpu.memory_space<semaphore_mem>> -> memref<!tpu.dma_semaphore, #tpu.memory_space<semaphore_mem>>
    tpu.enqueue_dma source(%68 : memref<64xf32, #tpu.memory_space<any>>) target(%70 : memref<64xf32, #tpu.memory_space<vmem>>) target_semaphore(%72 : memref<!tpu.dma_semaphore, #tpu.memory_space<semaphore_mem>>)
    %c0_i32_32 = arith.constant 0 : i32
    %c0_i32_33 = arith.constant 0 : i32
    %c0_i32_34 = arith.constant 0 : i32
    %73 = tpu.memref_slice %arg2[%3, %c0_i32_34] : memref<16x64xf32, #tpu.memory_space<any>> -> memref<1x64xf32, #tpu.memory_space<any>>
    %74 = tpu.memref_squeeze %73 : memref<1x64xf32, #tpu.memory_space<any>> -> memref<64xf32, #tpu.memory_space<any>>
    %c0_i32_35 = arith.constant 0 : i32
    %75 = tpu.memref_slice %arg5[%c0_i32_32, %c0_i32_35] : memref<8x64xf32, #tpu.memory_space<vmem>> -> memref<1x64xf32, #tpu.memory_space<vmem>>
    %76 = tpu.memref_squeeze %75 : memref<1x64xf32, #tpu.memory_space<vmem>> -> memref<64xf32, #tpu.memory_space<vmem>>
    %77 = tpu.memref_slice %arg6[%c0_i32_33] : memref<8x!tpu.dma_semaphore, #tpu.memory_space<semaphore_mem>> -> memref<1x!tpu.dma_semaphore, #tpu.memory_space<semaphore_mem>>
    %78 = tpu.memref_squeeze %77 : memref<1x!tpu.dma_semaphore, #tpu.memory_space<semaphore_mem>> -> memref<!tpu.dma_semaphore, #tpu.memory_space<semaphore_mem>>
    tpu.wait_dma2 semaphore(%78 : memref<!tpu.dma_semaphore, #tpu.memory_space<semaphore_mem>>) src(%74 : memref<64xf32, #tpu.memory_space<any>>) dst(%76 : memref<64xf32, #tpu.memory_space<vmem>>)
    %c1_i32_36 = arith.constant 1 : i32
    %c1_i32_37 = arith.constant 1 : i32
    %c0_i32_38 = arith.constant 0 : i32
    %79 = tpu.memref_slice %arg2[%12, %c0_i32_38] : memref<16x64xf32, #tpu.memory_space<any>> -> memref<1x64xf32, #tpu.memory_space<any>>
    %80 = tpu.memref_squeeze %79 : memref<1x64xf32, #tpu.memory_space<any>> -> memref<64xf32, #tpu.memory_space<any>>
    %c0_i32_39 = arith.constant 0 : i32
    %81 = tpu.memref_slice %arg5[%c1_i32_36, %c0_i32_39] : memref<8x64xf32, #tpu.memory_space<vmem>> -> memref<1x64xf32, #tpu.memory_space<vmem>>
    %82 = tpu.memref_squeeze %81 : memref<1x64xf32, #tpu.memory_space<vmem>> -> memref<64xf32, #tpu.memory_space<vmem>>
    %83 = tpu.memref_slice %arg6[%c1_i32_37] : memref<8x!tpu.dma_semaphore, #tpu.memory_space<semaphore_mem>> -> memref<1x!tpu.dma_semaphore, #tpu.memory_space<semaphore_mem>>
    %84 = tpu.memref_squeeze %83 : memref<1x!tpu.dma_semaphore, #tpu.memory_space<semaphore_mem>> -> memref<!tpu.dma_semaphore, #tpu.memory_space<semaphore_mem>>
    tpu.wait_dma2 semaphore(%84 : memref<!tpu.dma_semaphore, #tpu.memory_space<semaphore_mem>>) src(%80 : memref<64xf32, #tpu.memory_space<any>>) dst(%82 : memref<64xf32, #tpu.memory_space<vmem>>)
    %c2_i32_40 = arith.constant 2 : i32
    %c2_i32_41 = arith.constant 2 : i32
    %c0_i32_42 = arith.constant 0 : i32
    %85 = tpu.memref_slice %arg2[%21, %c0_i32_42] : memref<16x64xf32, #tpu.memory_space<any>> -> memref<1x64xf32, #tpu.memory_space<any>>
    %86 = tpu.memref_squeeze %85 : memref<1x64xf32, #tpu.memory_space<any>> -> memref<64xf32, #tpu.memory_space<any>>
    %c0_i32_43 = arith.constant 0 : i32
    %87 = tpu.memref_slice %arg5[%c2_i32_40, %c0_i32_43] : memref<8x64xf32, #tpu.memory_space<vmem>> -> memref<1x64xf32, #tpu.memory_space<vmem>>
    %88 = tpu.memref_squeeze %87 : memref<1x64xf32, #tpu.memory_space<vmem>> -> memref<64xf32, #tpu.memory_space<vmem>>
    %89 = tpu.memref_slice %arg6[%c2_i32_41] : memref<8x!tpu.dma_semaphore, #tpu.memory_space<semaphore_mem>> -> memref<1x!tpu.dma_semaphore, #tpu.memory_space<semaphore_mem>>
    %90 = tpu.memref_squeeze %89 : memref<1x!tpu.dma_semaphore, #tpu.memory_space<semaphore_mem>> -> memref<!tpu.dma_semaphore, #tpu.memory_space<semaphore_mem>>
    tpu.wait_dma2 semaphore(%90 : memref<!tpu.dma_semaphore, #tpu.memory_space<semaphore_mem>>) src(%86 : memref<64xf32, #tpu.memory_space<any>>) dst(%88 : memref<64xf32, #tpu.memory_space<vmem>>)
    %c3_i32_44 = arith.constant 3 : i32
    %c3_i32_45 = arith.constant 3 : i32
    %c0_i32_46 = arith.constant 0 : i32
    %91 = tpu.memref_slice %arg2[%30, %c0_i32_46] : memref<16x64xf32, #tpu.memory_space<any>> -> memref<1x64xf32, #tpu.memory_space<any>>
    %92 = tpu.memref_squeeze %91 : memref<1x64xf32, #tpu.memory_space<any>> -> memref<64xf32, #tpu.memory_space<any>>
    %c0_i32_47 = arith.constant 0 : i32
    %93 = tpu.memref_slice %arg5[%c3_i32_44, %c0_i32_47] : memref<8x64xf32, #tpu.memory_space<vmem>> -> memref<1x64xf32, #tpu.memory_space<vmem>>
    %94 = tpu.memref_squeeze %93 : memref<1x64xf32, #tpu.memory_space<vmem>> -> memref<64xf32, #tpu.memory_space<vmem>>
    %95 = tpu.memref_slice %arg6[%c3_i32_45] : memref<8x!tpu.dma_semaphore, #tpu.memory_space<semaphore_mem>> -> memref<1x!tpu.dma_semaphore, #tpu.memory_space<semaphore_mem>>
    %96 = tpu.memref_squeeze %95 : memref<1x!tpu.dma_semaphore, #tpu.memory_space<semaphore_mem>> -> memref<!tpu.dma_semaphore, #tpu.memory_space<semaphore_mem>>
    tpu.wait_dma2 semaphore(%96 : memref<!tpu.dma_semaphore, #tpu.memory_space<semaphore_mem>>) src(%92 : memref<64xf32, #tpu.memory_space<any>>) dst(%94 : memref<64xf32, #tpu.memory_space<vmem>>)
    %c4_i32_48 = arith.constant 4 : i32
    %c4_i32_49 = arith.constant 4 : i32
    %c0_i32_50 = arith.constant 0 : i32
    %97 = tpu.memref_slice %arg2[%39, %c0_i32_50] : memref<16x64xf32, #tpu.memory_space<any>> -> memref<1x64xf32, #tpu.memory_space<any>>
    %98 = tpu.memref_squeeze %97 : memref<1x64xf32, #tpu.memory_space<any>> -> memref<64xf32, #tpu.memory_space<any>>
    %c0_i32_51 = arith.constant 0 : i32
    %99 = tpu.memref_slice %arg5[%c4_i32_48, %c0_i32_51] : memref<8x64xf32, #tpu.memory_space<vmem>> -> memref<1x64xf32, #tpu.memory_space<vmem>>
    %100 = tpu.memref_squeeze %99 : memref<1x64xf32, #tpu.memory_space<vmem>> -> memref<64xf32, #tpu.memory_space<vmem>>
    %101 = tpu.memref_slice %arg6[%c4_i32_49] : memref<8x!tpu.dma_semaphore, #tpu.memory_space<semaphore_mem>> -> memref<1x!tpu.dma_semaphore, #tpu.memory_space<semaphore_mem>>
    %102 = tpu.memref_squeeze %101 : memref<1x!tpu.dma_semaphore, #tpu.memory_space<semaphore_mem>> -> memref<!tpu.dma_semaphore, #tpu.memory_space<semaphore_mem>>
    tpu.wait_dma2 semaphore(%102 : memref<!tpu.dma_semaphore, #tpu.memory_space<semaphore_mem>>) src(%98 : memref<64xf32, #tpu.memory_space<any>>) dst(%100 : memref<64xf32, #tpu.memory_space<vmem>>)
    %c5_i32_52 = arith.constant 5 : i32
    %c5_i32_53 = arith.constant 5 : i32
    %c0_i32_54 = arith.constant 0 : i32
    %103 = tpu.memref_slice %arg2[%48, %c0_i32_54] : memref<16x64xf32, #tpu.memory_space<any>> -> memref<1x64xf32, #tpu.memory_space<any>>
    %104 = tpu.memref_squeeze %103 : memref<1x64xf32, #tpu.memory_space<any>> -> memref<64xf32, #tpu.memory_space<any>>
    %c0_i32_55 = arith.constant 0 : i32
    %105 = tpu.memref_slice %arg5[%c5_i32_52, %c0_i32_55] : memref<8x64xf32, #tpu.memory_space<vmem>> -> memref<1x64xf32, #tpu.memory_space<vmem>>
    %106 = tpu.memref_squeeze %105 : memref<1x64xf32, #tpu.memory_space<vmem>> -> memref<64xf32, #tpu.memory_space<vmem>>
    %107 = tpu.memref_slice %arg6[%c5_i32_53] : memref<8x!tpu.dma_semaphore, #tpu.memory_space<semaphore_mem>> -> memref<1x!tpu.dma_semaphore, #tpu.memory_space<semaphore_mem>>
    %108 = tpu.memref_squeeze %107 : memref<1x!tpu.dma_semaphore, #tpu.memory_space<semaphore_mem>> -> memref<!tpu.dma_semaphore, #tpu.memory_space<semaphore_mem>>
    tpu.wait_dma2 semaphore(%108 : memref<!tpu.dma_semaphore, #tpu.memory_space<semaphore_mem>>) src(%104 : memref<64xf32, #tpu.memory_space<any>>) dst(%106 : memref<64xf32, #tpu.memory_space<vmem>>)
    %c6_i32_56 = arith.constant 6 : i32
    %c6_i32_57 = arith.constant 6 : i32
    %c0_i32_58 = arith.constant 0 : i32
    %109 = tpu.memref_slice %arg2[%57, %c0_i32_58] : memref<16x64xf32, #tpu.memory_space<any>> -> memref<1x64xf32, #tpu.memory_space<any>>
    %110 = tpu.memref_squeeze %109 : memref<1x64xf32, #tpu.memory_space<any>> -> memref<64xf32, #tpu.memory_space<any>>
    %c0_i32_59 = arith.constant 0 : i32
    %111 = tpu.memref_slice %arg5[%c6_i32_56, %c0_i32_59] : memref<8x64xf32, #tpu.memory_space<vmem>> -> memref<1x64xf32, #tpu.memory_space<vmem>>
    %112 = tpu.memref_squeeze %111 : memref<1x64xf32, #tpu.memory_space<vmem>> -> memref<64xf32, #tpu.memory_space<vmem>>
    %113 = tpu.memref_slice %arg6[%c6_i32_57] : memref<8x!tpu.dma_semaphore, #tpu.memory_space<semaphore_mem>> -> memref<1x!tpu.dma_semaphore, #tpu.memory_space<semaphore_mem>>
    %114 = tpu.memref_squeeze %113 : memref<1x!tpu.dma_semaphore, #tpu.memory_space<semaphore_mem>> -> memref<!tpu.dma_semaphore, #tpu.memory_space<semaphore_mem>>
    tpu.wait_dma2 semaphore(%114 : memref<!tpu.dma_semaphore, #tpu.memory_space<semaphore_mem>>) src(%110 : memref<64xf32, #tpu.memory_space<any>>) dst(%112 : memref<64xf32, #tpu.memory_space<vmem>>)
    %c7_i32_60 = arith.constant 7 : i32
    %c7_i32_61 = arith.constant 7 : i32
    %c0_i32_62 = arith.constant 0 : i32
    %115 = tpu.memref_slice %arg2[%66, %c0_i32_62] : memref<16x64xf32, #tpu.memory_space<any>> -> memref<1x64xf32, #tpu.memory_space<any>>
    %116 = tpu.memref_squeeze %115 : memref<1x64xf32, #tpu.memory_space<any>> -> memref<64xf32, #tpu.memory_space<any>>
    %c0_i32_63 = arith.constant 0 : i32
    %117 = tpu.memref_slice %arg5[%c7_i32_60, %c0_i32_63] : memref<8x64xf32, #tpu.memory_space<vmem>> -> memref<1x64xf32, #tpu.memory_space<vmem>>
    %118 = tpu.memref_squeeze %117 : memref<1x64xf32, #tpu.memory_space<vmem>> -> memref<64xf32, #tpu.memory_space<vmem>>
    %119 = tpu.memref_slice %arg6[%c7_i32_61] : memref<8x!tpu.dma_semaphore, #tpu.memory_space<semaphore_mem>> -> memref<1x!tpu.dma_semaphore, #tpu.memory_space<semaphore_mem>>
    %120 = tpu.memref_squeeze %119 : memref<1x!tpu.dma_semaphore, #tpu.memory_space<semaphore_mem>> -> memref<!tpu.dma_semaphore, #tpu.memory_space<semaphore_mem>>
    tpu.wait_dma2 semaphore(%120 : memref<!tpu.dma_semaphore, #tpu.memory_space<semaphore_mem>>) src(%116 : memref<64xf32, #tpu.memory_space<any>>) dst(%118 : memref<64xf32, #tpu.memory_space<vmem>>)
    %c0 = arith.constant 0 : index
    %c0_64 = arith.constant 0 : index
    %121 = vector.load %arg5[%c0, %c0_64] : memref<8x64xf32, #tpu.memory_space<vmem>>, vector<8x64xf32>
    %122 = tpu.iota {dimensions = array<i32: 1>} : vector<8x64xi32>
    %c0_i32_65 = arith.constant 0 : i32
    %123 = vector.broadcast %c0_i32_65 : i32 to vector<8x64xi32>
    %124 = arith.cmpi eq, %122, %123 : vector<8x64xi32>
    %c0_66 = arith.constant 0 : index
    %c0_67 = arith.constant 0 : index
    %125 = vector.load %arg3[%c0_66, %c0_67] : memref<8x1xf32, #tpu.memory_space<vmem>>, vector<8x1xf32>
    %126 = vector.shape_cast %125 : vector<8x1xf32> to vector<8x1xf32>
    %127 = vector.broadcast %126 : vector<8x1xf32> to vector<8x64xf32>
    %128 = arith.select %124, %127, %121 : vector<8x64xi1>, vector<8x64xf32>
    %c0_68 = arith.constant 0 : index
    %c0_69 = arith.constant 0 : index
    %129 = vector.load %arg4[%c0_68, %c0_69] : memref<8x64xf32, #tpu.memory_space<vmem>>, vector<8x64xf32>
    tpu.vector_store %arg4[%c0_68, %c0_69], %128 {strides = array<i32>} : memref<8x64xf32, #tpu.memory_space<vmem>>, vector<8x64xf32>,
    return
  }
  func.func @transform_1(%arg0: i32, %arg1: memref<8xi32, #tpu.memory_space<smem>>) -> (i32, i32) {
    %c0_i32 = arith.constant 0 : i32
    %c0_i32_0 = arith.constant 0 : i32
    return %arg0, %c0_i32 : i32, i32
  }
  func.func @transform_2(%arg0: i32, %arg1: memref<8xi32, #tpu.memory_space<smem>>) -> (i32, i32) {
    %c0_i32 = arith.constant 0 : i32
    %c0_i32_0 = arith.constant 0 : i32
    return %arg0, %c0_i32 : i32, i32
  }
}

</mosaic_0001>

<llo_original>
// kernel: tpu_custom_call.1
$region0: #{tpu_custom_call.1}
  #allocation0 [shape = 'u32[]', space=smem, size = 0x4, offset = 0x4, fixed_abs, tag = 'smem constant byte address 0x4 - core index']
  #allocation1 [shape = 'u32[72,128]{1,0:T(1,128)}', space=vmem, size = 0x9000, scoped, tag = 'internal scratch']
  #allocation2 [shape = 'f32[8,64]{1,0:T(8,128)}', space=vmem, size = 0x1000, scoped, tag = 'scratch operand']
  #allocation3 [shape = 's32[8]{0}', space=sflag, size = 0x20, scoped, tag = 'scratch operand']
  #allocation4 [shape = 's32[1]{0}', space=sflag, size = 0x4, scoped, tag = 'scoped memory for tpu_custom_call.1']
  #allocation5 [shape = 'u8[512]{0}', space=smem, size = 0x200, scoped, tag = 'prefetched SMEM operand 0']
  #allocation8 [shape = 's32[]', space=sflag, size = 0x4, offset = 0, fixed_abs, tag = 'sflag constant byte address 0x0 - dummy sync flag']
  #allocation9 [shape = 's32[]', space=sflag, size = 0x4, offset = 0, fixed_abs, tag = 'sflag constant byte address 0x0 - dummy sync flag']
  #allocation10 [shape = 'u32[]', space=smem, size = 0x4, offset = 0x44, fixed_abs, tag = 'smem constant byte address 0x44 - assertion arg 0']
  #allocation11 [shape = 'u32[]', space=smem, size = 0x4, offset = 0x48, fixed_abs, tag = 'smem constant byte address 0x48 - assertion arg 1']
  #allocation12 [shape = 's32[]', space=sflag, size = 0x4, offset = 0, fixed_abs, tag = 'sflag constant byte address 0x0 - dummy sync flag']
  #allocation13 [shape = 's32[]', space=sflag, size = 0x4, offset = 0, fixed_abs, tag = 'sflag constant byte address 0x0 - dummy sync flag']
  #allocation14 [shape = 's32[]', space=sflag, size = 0x4, offset = 0, fixed_abs, tag = 'sflag constant byte address 0x0 - dummy sync flag']
  #allocation15 [shape = 's32[]', space=sflag, size = 0x4, offset = 0, fixed_abs, tag = 'sflag constant byte address 0x0 - dummy sync flag']
  #allocation16 [shape = 's32[]', space=sflag, size = 0x4, offset = 0, fixed_abs, tag = 'sflag constant byte address 0x0 - dummy sync flag']
  #allocation17 [shape = 's32[]', space=sflag, size = 0x4, offset = 0, fixed_abs, tag = 'sflag constant byte address 0x0 - dummy sync flag']
  #allocation18 [shape = 's32[]', space=sflag, size = 0x4, offset = 0, fixed_abs, tag = 'sflag constant byte address 0x0 - dummy sync flag']
  #allocation19 [shape = 's32[]', space=sflag, size = 0x4, offset = 0, fixed_abs, tag = 'sflag constant byte address 0x0 - dummy sync flag']
  #allocation20 [shape = 's32[]', space=sflag, size = 0x4, offset = 0, fixed_abs, tag = 'sflag constant byte address 0x0 - dummy sync flag']
  #allocation21 [shape = 's32[]', space=sflag, size = 0x4, offset = 0, fixed_abs, tag = 'sflag constant byte address 0x0 - dummy sync flag']
  #allocation22 [shape = 's32[]', space=sflag, size = 0x4, offset = 0, fixed_abs, tag = 'sflag constant byte address 0x0 - dummy sync flag']
  #allocation23 [shape = 's32[]', space=sflag, size = 0x4, offset = 0, fixed_abs, tag = 'sflag constant byte address 0x0 - dummy sync flag']
  #allocation24 [shape = 's32[]', space=sflag, size = 0x4, offset = 0, fixed_abs, tag = 'sflag constant byte address 0x0 - dummy sync flag']
  #allocation25 [shape = 's32[]', space=sflag, size = 0x4, offset = 0, fixed_abs, tag = 'sflag constant byte address 0x0 - dummy sync flag']
  %s0 = inlined_call_operand.vmem [shape: s32[8], index: 0, kind: input, shape index: {}]
  %s1 = inlined_call_operand.hbm [shape: f32[16,64], index: 1, kind: input, shape index: {}]
  %s2 = inlined_call_operand.vmem [shape: f32[8,1], index: 2, kind: input, shape index: {}]
  %s3 = inlined_call_operand.hbm [shape: f32[8,64], index: 3, kind: output, shape index: {}]
  %s4 = sld [smem:[#allocation0]]
  $region46: #{tpu_custom_call.1} parent=0
    _
  %s6 = ssub.s32 1, %s4
  %s7 = scalar_select 0, %s6, %s4
  %s9 = sshll.u32 %s0, 4
  %s10 = int_to_ptr.vmem [resolvable:$true] %s9
  %12 = dma.vmem_to_smem %s10, 16, [#allocation5], [#allocation4]
  %14 = dma.done [#allocation4], 16
  %15 = sfence
  $region1: #{tpu_custom_call.1} parent=0
    #allocation6 [shape = 'u8[4096]{0}', space=vmem, size = 0x1000, scoped, tag = 'output window, operand 0, single buffered']
    #allocation7 [shape = 's32[1]{0}', space=sflag, size = 0x4, scoped, tag = 'scoped memory for tpu_custom_call.1']
    %16 = vsyncpa [#allocation7], 0
    // Predicated region
    $region2: #{tpu_custom_call.1} parent=1 // pred_check
      _
    $region3: #{tpu_custom_call.1} parent=1 // pred_check_branch
      %18 = sbr.rel (0) target = $region5
    $region4: #{tpu_custom_call.1} parent=1 // pred_region
      _
    $region5: #{tpu_custom_call.1} parent=1 // pred_fallthru
      _
    %s19 = smul.u32 0, 8
    %s20 = sld [smem:[#allocation5 + %s19]]
    %s21 = scalar_lea.hbm %s1, %s20
    // Predicated region
    $region6: #{tpu_custom_call.1} parent=1 // pred_check
      _
    $region7: #{tpu_custom_call.1} parent=1 // pred_check_branch
      %23 = sbr.rel target = $region9
    $region8: #{tpu_custom_call.1} parent=1 // pred_region
      %24 = sst [smem:[#allocation10]] [#allocation9]
      %25 = sst [smem:[#allocation11]] [#allocation8]
    $region9: #{tpu_custom_call.1} parent=1 // pred_fallthru
      _
    %27 = shalt.err (0)
    %s29 = sshll.u32 %s21, 4
    %s30 = int_to_ptr.hbm [resolvable:$true] %s29
    %s31 = sshll.u32 [#allocation2], 4
    %s32 = int_to_ptr.vmem [resolvable:$true] %s31
    %34 = dma.hbm_to_vmem [thread:$0]  %s30, 16, %s32, [#allocation3]
    %s35 = sadd.s32 %s19, 1
    %s36 = sld [smem:[#allocation5 + %s35]]
    %s37 = scalar_lea.hbm %s1, %s36
    %s38 = scalar_lea.vmem [#allocation2], 1
    %s39 = scalar_lea.sflag [#allocation3], 1
    // Predicated region
    $region10: #{tpu_custom_call.1} parent=1 // pred_check
      _
    $region11: #{tpu_custom_call.1} parent=1 // pred_check_branch
      %41 = sbr.rel target = $region13
    $region12: #{tpu_custom_call.1} parent=1 // pred_region
      %42 = sst [smem:[#allocation10]] [#allocation13]
      %43 = sst [smem:[#allocation11]] [#allocation12]
    $region13: #{tpu_custom_call.1} parent=1 // pred_fallthru
      _
    %45 = shalt.err (0)
    %s47 = sshll.u32 %s37, 4
    %s48 = int_to_ptr.hbm [resolvable:$true] %s47
    %s49 = sshll.u32 %s38, 4
    %s50 = int_to_ptr.vmem [resolvable:$true] %s49
    %52 = dma.hbm_to_vmem [thread:$0]  %s48, 16, %s50, %s39
    %s53 = sadd.s32 %s19, 2
    %s54 = sld [smem:[#allocation5 + %s53]]
    %s55 = scalar_lea.hbm %s1, %s54
    %s56 = scalar_lea.vmem [#allocation2], 2
    %s57 = scalar_lea.sflag [#allocation3], 2
    // Predicated region
    $region14: #{tpu_custom_call.1} parent=1 // pred_check
      _
    $region15: #{tpu_custom_call.1} parent=1 // pred_check_branch
      %59 = sbr.rel target = $region17
    $region16: #{tpu_custom_call.1} parent=1 // pred_region
      %60 = sst [smem:[#allocation10]] [#allocation15]
      %61 = sst [smem:[#allocation11]] [#allocation14]
    $region17: #{tpu_custom_call.1} parent=1 // pred_fallthru
      _
    %63 = shalt.err (0)
    %s65 = sshll.u32 %s55, 4
    %s66 = int_to_ptr.hbm [resolvable:$true] %s65
    %s67 = sshll.u32 %s56, 4
    %s68 = int_to_ptr.vmem [resolvable:$true] %s67
    %70 = dma.hbm_to_vmem [thread:$0]  %s66, 16, %s68, %s57
    %s71 = sadd.s32 %s19, 3
    %s72 = sld [smem:[#allocation5 + %s71]]
    %s73 = scalar_lea.hbm %s1, %s72
    %s74 = scalar_lea.vmem [#allocation2], 3
    %s75 = scalar_lea.sflag [#allocation3], 3
    // Predicated region
    $region18: #{tpu_custom_call.1} parent=1 // pred_check
      _
    $region19: #{tpu_custom_call.1} parent=1 // pred_check_branch
      %77 = sbr.rel target = $region21
    $region20: #{tpu_custom_call.1} parent=1 // pred_region
      %78 = sst [smem:[#allocation10]] [#allocation17]
      %79 = sst [smem:[#allocation11]] [#allocation16]
    $region21: #{tpu_custom_call.1} parent=1 // pred_fallthru
      _
    %81 = shalt.err (0)
    %s83 = sshll.u32 %s73, 4
    %s84 = int_to_ptr.hbm [resolvable:$true] %s83
    %s85 = sshll.u32 %s74, 4
    %s86 = int_to_ptr.vmem [resolvable:$true] %s85
    %88 = dma.hbm_to_vmem [thread:$0]  %s84, 16, %s86, %s75
    %s89 = sadd.s32 %s19, 4
    %s90 = sld [smem:[#allocation5 + %s89]]
    %s91 = scalar_lea.hbm %s1, %s90
    %s92 = scalar_lea.vmem [#allocation2], 4
    %s93 = scalar_lea.sflag [#allocation3], 4
    // Predicated region
    $region22: #{tpu_custom_call.1} parent=1 // pred_check
      _
    $region23: #{tpu_custom_call.1} parent=1 // pred_check_branch
      %95 = sbr.rel target = $region25
    $region24: #{tpu_custom_call.1} parent=1 // pred_region
      %96 = sst [smem:[#allocation10]] [#allocation19]
      %97 = sst [smem:[#allocation11]] [#allocation18]
    $region25: #{tpu_custom_call.1} parent=1 // pred_fallthru
      _
    %99 = shalt.err (0)
    %s101 = sshll.u32 %s91, 4
    %s102 = int_to_ptr.hbm [resolvable:$true] %s101
    %s103 = sshll.u32 %s92, 4
    %s104 = int_to_ptr.vmem [resolvable:$true] %s103
    %106 = dma.hbm_to_vmem [thread:$0]  %s102, 16, %s104, %s93
    %s107 = sadd.s32 %s19, 5
    %s108 = sld [smem:[#allocation5 + %s107]]
    %s109 = scalar_lea.hbm %s1, %s108
    %s110 = scalar_lea.vmem [#allocation2], 5
    %s111 = scalar_lea.sflag [#allocation3], 5
    // Predicated region
    $region26: #{tpu_custom_call.1} parent=1 // pred_check
      _
    $region27: #{tpu_custom_call.1} parent=1 // pred_check_branch
      %113 = sbr.rel target = $region29
    $region28: #{tpu_custom_call.1} parent=1 // pred_region
      %114 = sst [smem:[#allocation10]] [#allocation21]
      %115 = sst [smem:[#allocation11]] [#allocation20]
    $region29: #{tpu_custom_call.1} parent=1 // pred_fallthru
      _
    %117 = shalt.err (0)
    %s119 = sshll.u32 %s109, 4
    %s120 = int_to_ptr.hbm [resolvable:$true] %s119
    %s121 = sshll.u32 %s110, 4
    %s122 = int_to_ptr.vmem [resolvable:$true] %s121
    %124 = dma.hbm_to_vmem [thread:$0]  %s120, 16, %s122, %s111
    %s125 = sadd.s32 %s19, 6
    %s126 = sld [smem:[#allocation5 + %s125]]
    %s127 = scalar_lea.hbm %s1, %s126
    %s128 = scalar_lea.vmem [#allocation2], 6
    %s129 = scalar_lea.sflag [#allocation3], 6
    // Predicated region
    $region30: #{tpu_custom_call.1} parent=1 // pred_check
      _
    $region31: #{tpu_custom_call.1} parent=1 // pred_check_branch
      %131 = sbr.rel target = $region33
    $region32: #{tpu_custom_call.1} parent=1 // pred_region
      %132 = sst [smem:[#allocation10]] [#allocation23]
      %133 = sst [smem:[#allocation11]] [#allocation22]
    $region33: #{tpu_custom_call.1} parent=1 // pred_fallthru
      _
    %135 = shalt.err (0)
    %s137 = sshll.u32 %s127, 4
    %s138 = int_to_ptr.hbm [resolvable:$true] %s137
    %s139 = sshll.u32 %s128, 4
    %s140 = int_to_ptr.vmem [resolvable:$true] %s139
    %142 = dma.hbm_to_vmem [thread:$0]  %s138, 16, %s140, %s129
    %s143 = sadd.s32 %s19, 7
    %s144 = sld [smem:[#allocation5 + %s143]]
    %s145 = scalar_lea.hbm %s1, %s144
    %s146 = scalar_lea.vmem [#allocation2], 7
    %s147 = scalar_lea.sflag [#allocation3], 7
    // Predicated region
    $region34: #{tpu_custom_call.1} parent=1 // pred_check
      _
    $region35: #{tpu_custom_call.1} parent=1 // pred_check_branch
      %149 = sbr.rel target = $region37
    $region36: #{tpu_custom_call.1} parent=1 // pred_region
      %150 = sst [smem:[#allocation10]] [#allocation25]
      %151 = sst [smem:[#allocation11]] [#allocation24]
    $region37: #{tpu_custom_call.1} parent=1 // pred_fallthru
      _
    %153 = shalt.err (0)
    %s155 = sshll.u32 %s145, 4
    %s156 = int_to_ptr.hbm [resolvable:$true] %s155
    %s157 = sshll.u32 %s146, 4
    %s158 = int_to_ptr.vmem [resolvable:$true] %s157
    %160 = dma.hbm_to_vmem [thread:$0]  %s156, 16, %s158, %s147
    %162 = dma.done [#allocation3], 16
    %164 = dma.done %s39, 16
    %166 = dma.done %s57, 16
    %168 = dma.done %s75, 16
    %170 = dma.done %s93, 16
    %172 = dma.done %s111, 16
    %174 = dma.done %s129, 16
    %176 = dma.done %s147, 16
    %v177 = vld [vmem:[#allocation2] sm:$0xff]
    %v178 = vlaneseq
    %v179 = vand.u32 %v178, 127
    %vm180 = vcmp.eq.s32.totalorder %v179, 0
    %v181 = vld [vmem:[%s2] sm:$0xff]
    %183 = vset.pattern.permute.xlu0 0
    %184 = vperm.xlu0 %183, %v181
    %v185 = vpop.permute.xlu0 %184
    %v187 = vsel %vm180, %v185, %v177
    %vm188 = vcmask 523264
    %189 = vst.msk [vmem:[#allocation6] sm:$0xff] %vm188, %v187
    // Predicated region
    $region38: #{tpu_custom_call.1} parent=1 // pred_check
      _
    $region39: #{tpu_custom_call.1} parent=1 // pred_check_branch
      %191 = sbr.rel (0) target = $region41
    $region40: #{tpu_custom_call.1} parent=1 // pred_region
      %193 = vsyncadd [#allocation7], 0
      %s195 = sshll.u32 [#allocation6], 4
      %s196 = int_to_ptr.vmem [resolvable:$true] %s195
      %s197 = sshll.u32 %s3, 4
      %s198 = int_to_ptr.hbm [resolvable:$true] %s197
      %200 = dma.vmem_to_hbm [thread:$0]  %s196, 128, %s198, [#allocation7]
    $region41: #{tpu_custom_call.1} parent=1 // pred_fallthru
      _
    // Predicated region
    $region42: #{tpu_custom_call.1} parent=1 // pred_check
      _
    $region43: #{tpu_custom_call.1} parent=1 // pred_check_branch
      %202 = sbr.rel (0) target = $region45
    $region44: #{tpu_custom_call.1} parent=1 // pred_region
      %204 = dma.done [#allocation7], 128
    $region45: #{tpu_custom_call.1} parent=1 // pred_fallthru
      _
    %205 = vsyncpa [#allocation7], 1
  %206 = vsyncmov [#allocation3]
  %s207 = vpop.sfrf %206
  %p208 = scmp.eq.s32.totalorder %s207, 0
  %p209 = pneg %p208
  %211 = shalt.err (%p209)
  %s212 = scalar_lea.sflag [#allocation3], 1
  %213 = vsyncmov %s212
  %s214 = vpop.sfrf %213
  %p215 = scmp.eq.s32.totalorder %s214, 0
  %p216 = pneg %p215
  %218 = shalt.err (%p216)
  %s219 = scalar_lea.sflag [#allocation3], 2
  %220 = vsyncmov %s219
  %s221 = vpop.sfrf %220
  %p222 = scmp.eq.s32.totalorder %s221, 0
  %p223 = pneg %p222
  %225 = shalt.err (%p223)
  %s226 = scalar_lea.sflag [#allocation3], 3
  %227 = vsyncmov %s226
  %s228 = vpop.sfrf %227
  %p229 = scmp.eq.s32.totalorder %s228, 0
  %p230 = pneg %p229
  %232 = shalt.err (%p230)
  %s233 = scalar_lea.sflag [#allocation3], 4
  %234 = vsyncmov %s233
  %s235 = vpop.sfrf %234
  %p236 = scmp.eq.s32.totalorder %s235, 0
  %p237 = pneg %p236
  %239 = shalt.err (%p237)
  %s240 = scalar_lea.sflag [#allocation3], 5
  %241 = vsyncmov %s240
  %s242 = vpop.sfrf %241
  %p243 = scmp.eq.s32.totalorder %s242, 0
  %p244 = pneg %p243
  %246 = shalt.err (%p244)
  %s247 = scalar_lea.sflag [#allocation3], 6
  %248 = vsyncmov %s247
  %s249 = vpop.sfrf %248
  %p250 = scmp.eq.s32.totalorder %s249, 0
  %p251 = pneg %p250
  %253 = shalt.err (%p251)
  %s254 = scalar_lea.sflag [#allocation3], 7
  %255 = vsyncmov %s254
  %s256 = vpop.sfrf %255
  %p257 = scmp.eq.s32.totalorder %s256, 0
  %p258 = pneg %p257
  %260 = shalt.err (%p258)

</llo_original>
